<compile_context>
chip_gen: v7x
topology: tpu7x:2x2x1
jax: 0.10.0
libtpu: 0.0.40
codegen_flags: <defaults>
</compile_context>

<pallas_src>
import functools
import math

import jax
import jax.numpy as jnp
from jax import lax
from jax.experimental import pallas as pl
from jax.experimental.pallas import tpu as pltpu


def _round_up(x, m):
    return (x + m - 1) // m * m


def _vmem_budget_bytes():
    """Generation-aware VMEM budget with headroom for compiler scratch / semaphores."""
    try:
        cap = int(pltpu.get_tpu_info().vmem_capacity_bytes)
    except Exception:
        cap = 64 * 2**20  # conservative fallback (v7x per-TC size)
    # ~52 MiB on v7x (64 MiB physical), ~105 MiB on v5e/v6e (128 MiB physical)
    return int(cap * 0.82)


def simba_kernel(x_ref, gamma_ref, beta_ref, w1_ref, b1_ref, w2_ref, b2_ref,
                 o_ref, y_sc, acc_sc, *, h_real, eps):
    """Grid = (batch_tiles, hs_tiles). Axis 1 tiles the intermediate (H*sf) dim.

    j == 0      : LayerNorm the x tile once, stash normalized activations in y_sc,
                  seed the f32 accumulator with the residual.
    every j     : h = relu(y @ w1[:, j*tn:(j+1)*tn] + b1[j])   (tb, tn)
                  acc += h @ w2[j*tn:(j+1)*tn, :]              (tb, Hp)
    j == last   : out = acc + b2
    """
    j = pl.program_id(1)

    @pl.when(j == 0)
    def _init():
        x = x_ref[...].astype(jnp.float32)                      # (tb, Hp)
        tb, hp = x.shape
        inv_h = 1.0 / float(h_real)
        # Padded feature columns of x are zero, so plain sums are already correct for the mean.
        mean = jnp.sum(x, axis=-1, keepdims=True) * inv_h
        if hp != h_real:
            col = lax.broadcasted_iota(jnp.int32, (tb, hp), 1)
            diff = jnp.where(col < h_real, x - mean, 0.0)
        else:
            diff = x - mean
        var = jnp.sum(diff * diff, axis=-1, keepdims=True) * inv_h  # biased var (PyTorch LayerNorm)
        xn = (x - mean) * lax.rsqrt(var + eps)
        # gamma/beta zero-padded -> padded columns of y are exactly 0.
        y = xn * gamma_ref[...] + beta_ref[...]
        y_sc[...] = y.astype(y_sc.dtype)                        # matmul operand dtype (bf16)
        acc_sc[...] = x                                         # residual seeds the accumulator

    # linear1 tile + ReLU (bf16 MXU, f32 accumulate)
    h = jnp.dot(y_sc[...], w1_ref[...], preferred_element_type=jnp.float32)
    h = jnp.maximum(h + b1_ref[...], 0.0)                       # (tb, tn)

    # linear2 partial product accumulated in f32 scratch
    acc_sc[...] += jnp.dot(h.astype(w2_ref.dtype), w2_ref[...],
                           preferred_element_type=jnp.float32)  # (tb, Hp)

    @pl.when(j == pl.num_programs(1) - 1)
    def _finalize():
        o_ref[...] = (acc_sc[...] + b2_ref[...]).astype(o_ref.dtype)


def prepare_params(gamma, beta, w1, b1, w2, b2, *, matmul_dtype=jnp.bfloat16, tn=1024):
    """Pad/cast parameters ONCE (hoisted out of the forward path).

    gamma/beta: (H,), w1: (H, H*sf), b1: (H*sf,), w2: (H*sf, H), b2: (H,).
    Weights are cast to `matmul_dtype` (bf16 by default) for the MXU; affine params and
    biases stay f32 (they enter after the f32-accumulated matmuls).
    """
    assert tn % 128 == 0
    H, Hs = w1.shape
    assert w2.shape == (Hs, H)

    Hp = _round_up(H, 128)
    Hsp = _round_up(Hs, 128)
    tn = min(tn, Hsp)
    Hsp = _round_up(Hsp, tn)          # keep the Hs tile an exact divisor without shrinking it

    f32 = jnp.float32
    gp = jnp.pad(gamma.reshape(1, -1).astype(f32), ((0, 0), (0, Hp - H)))
    bp = jnp.pad(beta.reshape(1, -1).astype(f32), ((0, 0), (0, Hp - H)))
    b1p = jnp.pad(b1.reshape(1, -1).astype(f32), ((0, 0), (0, Hsp - Hs)))
    b2p = jnp.pad(b2.reshape(1, -1).astype(f32), ((0, 0), (0, Hp - H)))
    w1p = jnp.pad(w1.astype(matmul_dtype), ((0, Hp - H), (0, Hsp - Hs)))
    w2p = jnp.pad(w2.astype(matmul_dtype), ((0, Hsp - Hs), (0, Hp - H)))

    return dict(gamma=gp, beta=bp, w1=w1p, b1=b1p, w2=w2p, b2=b2p,
                H=H, Hs=Hs, Hp=Hp, Hsp=Hsp, tn=tn)


def simba_forward(x, prepared, *, tb=256, eps=1e-5):
    """x: (B, H) f32. `prepared` comes from prepare_params (weights already padded/cast)."""
    B, H = x.shape
    assert H == prepared["H"]
    Hp, Hsp, tn = prepared["Hp"], prepared["Hsp"], prepared["tn"]
    w1p, w2p = prepared["w1"], prepared["w2"]
    gp, bp, b1p, b2p = prepared["gamma"], prepared["beta"], prepared["b1"], prepared["b2"]

    w_isz = jnp.dtype(w1p.dtype).itemsize
    x_isz = jnp.dtype(x.dtype).itemsize
    budget = _vmem_budget_bytes()

    assert tb % 8 == 0
    tb_eff = min(tb, _round_up(B, 8))

    def act_bytes(tbv):
        return (2 * tbv * Hp * x_isz                      # x tile (double-buffered)
                + 2 * tbv * Hp * x_isz                    # out tile
                + tbv * Hp * w_isz                        # y scratch (bf16)
                + tbv * Hp * 4                            # f32 accumulator scratch
                + 2 * (2 * Hp * 4 + Hsp * 4 + Hp * 4))    # gamma/beta/b1/b2 (generous)

    # Prefer fully VMEM-resident weights: constant index maps -> DMA'd once, reused by every
    # batch tile (eliminates per-tile weight re-streaming, the dominant HBM term).
    resident_weight_bytes = 2 * 2 * Hp * Hsp * w_isz      # w1 + w2, double-buffered allocation
    resident = act_bytes(tb_eff) + resident_weight_bytes <= budget

    if resident:
        tn_eff = Hsp
        n_wbuf = 2
    else:
        tn_eff = min(tn, Hsp)
        n_wbuf = 3 if act_bytes(tb_eff) + 3 * 2 * Hp * tn_eff * w_isz <= budget else 2
        while tb_eff > 8 and act_bytes(tb_eff) + n_wbuf * 2 * Hp * tn_eff * w_isz > budget:
            tb_eff = _round_up(tb_eff // 2, 8)

    Bp = _round_up(B, tb_eff)

    # v7x megacore: with resident weights an extra batch tile costs no extra HBM traffic;
    # guarantee >= 2 steps on the "parallel" batch axis so the second TensorCore gets work.
    # (No-op on 1-TC chips.)
    if resident and Bp // tb_eff == 1 and tb_eff >= 16:
        tb_eff = _round_up(max(_round_up(B, 8) // 2, 8), 8)
        Bp = _round_up(B, tb_eff)

    num_j = Hsp // tn_eff
    grid = (Bp // tb_eff, num_j)

    xp = jnp.pad(x, ((0, Bp - B), (0, Hp - H)))

    # VMEM limit from the actual tiles, capped by the per-generation budget.
    tile_bytes = act_bytes(tb_eff) + n_wbuf * (Hp * tn_eff + tn_eff * Hp) * w_isz
    vmem_limit = int(min(max(tile_bytes + (2 << 20), 8 * 2**20), budget))

    cost = pl.CostEstimate(
        flops=int(4 * Bp * Hp * Hsp),
        transcendentals=int(Bp),
        bytes_accessed=int(
            2 * Bp * Hp * x_isz
            + w1p.size * w_isz + w2p.size * w_isz
            + (gp.size + bp.size + b1p.size + b2p.size) * 4
        ),
    )

    use_buf3 = (not resident) and n_wbuf == 3 and num_j >= 3
    w_pipe = dict(pipeline_mode=pl.Buffered(3)) if use_buf3 else {}
    w1_spec = pl.BlockSpec((Hp, tn_eff), lambda i, j: (0, j), **w_pipe)
    w2_spec = pl.BlockSpec((tn_eff, Hp), lambda i, j: (j, 0), **w_pipe)

    kernel = functools.partial(simba_kernel, h_real=H, eps=eps)

    out = pl.pallas_call(
        kernel,
        out_shape=jax.ShapeDtypeStruct((Bp, Hp), x.dtype),
        grid_spec=pltpu.PrefetchScalarGridSpec(
            num_scalar_prefetch=0,
            grid=grid,
            in_specs=[
                pl.BlockSpec((tb_eff, Hp), lambda i, j: (i, 0)),     # x tile (resident across j)
                pl.BlockSpec((1, Hp), lambda i, j: (0, 0)),          # gamma
                pl.BlockSpec((1, Hp), lambda i, j: (0, 0)),          # beta
                w1_spec,                                             # w1 (in, out) tile over Hs
                pl.BlockSpec((1, tn_eff), lambda i, j: (0, j)),      # b1 tile
                w2_spec,                                             # w2 (in, out) tile over Hs
                pl.BlockSpec((1, Hp), lambda i, j: (0, 0)),          # b2
            ],
            out_specs=pl.BlockSpec((tb_eff, Hp), lambda i, j: (i, 0)),
            scratch_shapes=[
                pltpu.VMEM((tb_eff, Hp), w1p.dtype),                 # normalized activations (bf16)
                pltpu.VMEM((tb_eff, Hp), jnp.float32),               # linear2 accumulator (+residual)
            ],
        ),
        compiler_params=pltpu.CompilerParams(
            dimension_semantics=("parallel", "arbitrary"),
            vmem_limit_bytes=vmem_limit,
        ),
        cost_estimate=cost,
    )(xp, gp, bp, w1p, b1p, w2p, b2p)

    return out[:B, :H]


def init_params(key, hidden_size, scale_factor=4, dtype=jnp.float32):
    """Deterministic synthetic init mirroring the PyTorch module's parameter shapes (f32 masters)."""
    H = hidden_size
    Hs = hidden_size * scale_factor
    k1, k2, k3, k4 = jax.random.split(key, 4)

    def kaiming_uniform(k, out_f, in_f):
        # PyTorch kaiming_uniform_ default: a=0 -> gain=sqrt(2), bound = gain*sqrt(3/fan_in)
        bound = math.sqrt(2.0) * math.sqrt(3.0 / in_f)
        return jax.random.uniform(k, (out_f, in_f), dtype, -bound, bound)

    w1_pt = kaiming_uniform(k1, Hs, H)       # PyTorch layout (out, in)
    w2_pt = kaiming_uniform(k2, H, Hs)
    b1 = jax.random.uniform(k3, (Hs,), dtype, -1.0 / math.sqrt(H), 1.0 / math.sqrt(H))
    b2 = jax.random.uniform(k4, (H,), dtype, -1.0 / math.sqrt(Hs), 1.0 / math.sqrt(Hs))
    gamma = jnp.ones((H,), dtype)
    beta = jnp.zeros((H,), dtype)

    # Glue: transpose weights to (in, out); biases/affine kept 1D.
    return dict(gamma=gamma, beta=beta, w1=w1_pt.T, b1=b1, w2=w2_pt.T, b2=b2)


def reference_forward(x, p, *, matmul_dtype=jnp.bfloat16, eps=1e-5):
    """Pure-JAX reference matching PyTorch semantics, with the same bf16 matmul operands
    and f32 accumulation the kernel uses."""
    mean = jnp.mean(x, axis=-1, keepdims=True)
    var = jnp.mean((x - mean) ** 2, axis=-1, keepdims=True)
    y = (x - mean) * lax.rsqrt(var + eps) * p["gamma"] + p["beta"]
    h = jnp.dot(y.astype(matmul_dtype), p["w1"].astype(matmul_dtype),
                preferred_element_type=jnp.float32) + p["b1"]
    h = jnp.maximum(h, 0.0)
    out = jnp.dot(h.astype(matmul_dtype), p["w2"].astype(matmul_dtype),
                  preferred_element_type=jnp.float32) + p["b2"]
    return x + out


if __name__ == "__main__":
    hidden_size = 32
    scale_factor = 4
    batch = 16

    key = jax.random.PRNGKey(0)
    kx, kp = jax.random.split(key)
    x = jax.random.normal(kx, (batch, hidden_size), jnp.float32)
    params = init_params(kp, hidden_size, scale_factor)

    # Pad + cast weights once (hoisted out of the forward path); forward pads only x.
    prepared = prepare_params(params["gamma"], params["beta"],
                              params["w1"], params["b1"],
                              params["w2"], params["b2"],
                              matmul_dtype=jnp.bfloat16, tn=1024)

    out = simba_forward(x, prepared)
    out = jax.block_until_ready(out)

    ref = reference_forward(x, params, matmul_dtype=jnp.bfloat16)
    assert out.shape == (batch, hidden_size)
    assert jnp.allclose(out, ref, atol=1e-2, rtol=1e-2), "mismatch vs reference"
    print("KERNEL_OK")
</pallas_src>

<mosaic_0001>
module attributes {stable_mosaic.version = 11 : i64} {
  func.func @simba_kernel(%arg0: i32, %arg1: i32, %arg2: memref<8x128xf32, #tpu.memory_space<vmem>>, %arg3: memref<1x128xf32, #tpu.memory_space<vmem>>, %arg4: memref<1x128xf32, #tpu.memory_space<vmem>>, %arg5: memref<128x128xbf16, #tpu.memory_space<vmem>>, %arg6: memref<1x128xf32, #tpu.memory_space<vmem>>, %arg7: memref<128x128xbf16, #tpu.memory_space<vmem>>, %arg8: memref<1x128xf32, #tpu.memory_space<vmem>>, %arg9: memref<8x128xf32, #tpu.memory_space<vmem>>, %arg10: memref<8x128xbf16, #tpu.memory_space<vmem>>, %arg11: memref<8x128xf32, #tpu.memory_space<vmem>>) attributes {dimension_semantics = [#tpu.dimension_semantics<parallel>, #tpu.dimension_semantics<arbitrary>], iteration_bounds = array<i64: 2, 1>, scalar_prefetch = 0 : i64, scratch_operands = 2 : i64, tpu.core_type = #tpu.core_type<tc>, window_params = [{transform_indices = @transform_0, window_bounds = array<i64: 8, 128>}, {pipeline_mode = #tpu.pipeline_mode<synchronous>, transform_indices = @transform_1, window_bounds = array<i64: 1, 128>}, {pipeline_mode = #tpu.pipeline_mode<synchronous>, transform_indices = @transform_2, window_bounds = array<i64: 1, 128>}, {transform_indices = @transform_3, window_bounds = array<i64: 128, 128>}, {transform_indices = @transform_4, window_bounds = array<i64: 1, 128>}, {transform_indices = @transform_5, window_bounds = array<i64: 128, 128>}, {pipeline_mode = #tpu.pipeline_mode<synchronous>, transform_indices = @transform_6, window_bounds = array<i64: 1, 128>}, {transform_indices = @transform_7, window_bounds = array<i64: 8, 128>}]} {
    %c0_i32 = arith.constant 0 : i32
    %0 = arith.cmpi eq, %arg1, %c0_i32 : i32
    %1 = arith.extui %0 : i1 to i32
    %c0_i32_0 = arith.constant 0 : i32
    %2 = arith.cmpi ne, %1, %c0_i32_0 : i32
    scf.if %2 {
      %c0_16 = arith.constant 0 : index
      %c0_17 = arith.constant 0 : index
      %20 = vector.load %arg2[%c0_16, %c0_17] : memref<8x128xf32, #tpu.memory_space<vmem>>, vector<8x128xf32>
      %cst_18 = arith.constant dense<0.000000e+00> : vector<8xf32>
      %21 = vector.multi_reduction <add>, %20, %cst_18 [1] : vector<8x128xf32> to vector<8xf32>
      %22 = vector.shape_cast %21 : vector<8xf32> to vector<8x1xf32>
      %cst_19 = arith.constant 3.125000e-02 : f32
      %23 = vector.broadcast %cst_19 : f32 to vector<8x1xf32>
      %24 = arith.mulf %22, %23 : vector<8x1xf32>
      %25 = tpu.iota {dimensions = array<i32: 1>} : vector<8x128xi32>
      %c32_i32 = arith.constant 32 : i32
      %26 = vector.broadcast %c32_i32 : i32 to vector<8x128xi32>
      %27 = arith.cmpi slt, %25, %26 : vector<8x128xi32>
      %28 = vector.broadcast %24 : vector<8x1xf32> to vector<8x128xf32>
      %29 = arith.subf %20, %28 : vector<8x128xf32>
      %cst_20 = arith.constant 0.000000e+00 : f32
      %30 = vector.broadcast %cst_20 : f32 to vector<8x128xf32>
      %31 = arith.select %27, %29, %30 : vector<8x128xi1>, vector<8x128xf32>
      %32 = arith.mulf %31, %31 : vector<8x128xf32>
      %cst_21 = arith.constant dense<0.000000e+00> : vector<8xf32>
      %33 = vector.multi_reduction <add>, %32, %cst_21 [1] : vector<8x128xf32> to vector<8xf32>
      %34 = vector.shape_cast %33 : vector<8xf32> to vector<8x1xf32>
      %cst_22 = arith.constant 3.125000e-02 : f32
      %35 = vector.broadcast %cst_22 : f32 to vector<8x1xf32>
      %36 = arith.mulf %34, %35 : vector<8x1xf32>
      %37 = vector.broadcast %24 : vector<8x1xf32> to vector<8x128xf32>
      %38 = arith.subf %20, %37 : vector<8x128xf32>
      %cst_23 = arith.constant 9.99999974E-6 : f32
      %39 = vector.broadcast %cst_23 : f32 to vector<8x1xf32>
      %40 = arith.addf %36, %39 : vector<8x1xf32>
      %41 = math.rsqrt %40 : vector<8x1xf32>
      %42 = vector.broadcast %41 : vector<8x1xf32> to vector<8x128xf32>
      %43 = arith.mulf %38, %42 : vector<8x128xf32>
      %c0_24 = arith.constant 0 : index
      %c0_25 = arith.constant 0 : index
      %44 = vector.load %arg3[%c0_24, %c0_25] : memref<1x128xf32, #tpu.memory_space<vmem>>, vector<1x128xf32>
      %45 = vector.broadcast %44 : vector<1x128xf32> to vector<8x128xf32>
      %46 = arith.mulf %43, %45 : vector<8x128xf32>
      %c0_26 = arith.constant 0 : index
      %c0_27 = arith.constant 0 : index
      %47 = vector.load %arg4[%c0_26, %c0_27] : memref<1x128xf32, #tpu.memory_space<vmem>>, vector<1x128xf32>
      %48 = vector.broadcast %47 : vector<1x128xf32> to vector<8x128xf32>
      %49 = arith.addf %46, %48 : vector<8x128xf32>
      %50 = arith.truncf %49 : vector<8x128xf32> to vector<8x128xbf16>
      %c0_28 = arith.constant 0 : index
      %c0_29 = arith.constant 0 : index
      %51 = vector.load %arg10[%c0_28, %c0_29] : memref<8x128xbf16, #tpu.memory_space<vmem>>, vector<8x128xbf16>
      tpu.vector_store %arg10[%c0_28, %c0_29], %50 {strides = array<i32>} : memref<8x128xbf16, #tpu.memory_space<vmem>>, vector<8x128xbf16>,
      %c0_30 = arith.constant 0 : index
      %c0_31 = arith.constant 0 : index
      %52 = vector.load %arg11[%c0_30, %c0_31] : memref<8x128xf32, #tpu.memory_space<vmem>>, vector<8x128xf32>
      tpu.vector_store %arg11[%c0_30, %c0_31], %20 {strides = array<i32>} : memref<8x128xf32, #tpu.memory_space<vmem>>, vector<8x128xf32>,
    } else {
    }
    %c0 = arith.constant 0 : index
    %c0_1 = arith.constant 0 : index
    %3 = vector.load %arg10[%c0, %c0_1] : memref<8x128xbf16, #tpu.memory_space<vmem>>, vector<8x128xbf16>
    %c0_2 = arith.constant 0 : index
    %c0_3 = arith.constant 0 : index
    %4 = vector.load %arg5[%c0_2, %c0_3] : memref<128x128xbf16, #tpu.memory_space<vmem>>, vector<128x128xbf16>
    %cst = arith.constant dense<0.000000e+00> : vector<8x128xf32>
    %5 = tpu.matmul %3, %4, %cst {dimension_numbers = #tpu.dot_dimension_numbers<[1], [0], [0], [1], [0, 0, 1, 1], [], []>} : vector<8x128xbf16>, vector<128x128xbf16>, vector<8x128xf32> -> vector<8x128xf32>
    %c0_4 = arith.constant 0 : index
    %c0_5 = arith.constant 0 : index
    %6 = vector.load %arg6[%c0_4, %c0_5] : memref<1x128xf32, #tpu.memory_space<vmem>>, vector<1x128xf32>
    %7 = vector.broadcast %6 : vector<1x128xf32> to vector<8x128xf32>
    %8 = arith.addf %5, %7 : vector<8x128xf32>
    %cst_6 = arith.constant 0.000000e+00 : f32
    %9 = vector.broadcast %cst_6 : f32 to vector<8x128xf32>
    %10 = arith.maximumf %8, %9 : vector<8x128xf32>
    %c0_7 = arith.constant 0 : index
    %c0_8 = arith.constant 0 : index
    %11 = vector.load %arg11[%c0_7, %c0_8] : memref<8x128xf32, #tpu.memory_space<vmem>>, vector<8x128xf32>
    %12 = arith.truncf %10 : vector<8x128xf32> to vector<8x128xbf16>
    %c0_9 = arith.constant 0 : index
    %c0_10 = arith.constant 0 : index
    %13 = vector.load %arg7[%c0_9, %c0_10] : memref<128x128xbf16, #tpu.memory_space<vmem>>, vector<128x128xbf16>
    %cst_11 = arith.constant dense<0.000000e+00> : vector<8x128xf32>
    %14 = tpu.matmul %12, %13, %cst_11 {dimension_numbers = #tpu.dot_dimension_numbers<[1], [0], [0], [1], [0, 0, 1, 1], [], []>} : vector<8x128xbf16>, vector<128x128xbf16>, vector<8x128xf32> -> vector<8x128xf32>
    %15 = arith.addf %11, %14 : vector<8x128xf32>
    %c0_12 = arith.constant 0 : index
    %c0_13 = arith.constant 0 : index
    %16 = vector.load %arg11[%c0_12, %c0_13] : memref<8x128xf32, #tpu.memory_space<vmem>>, vector<8x128xf32>
    tpu.vector_store %arg11[%c0_12, %c0_13], %15 {strides = array<i32>} : memref<8x128xf32, #tpu.memory_space<vmem>>, vector<8x128xf32>,
    %c0_i32_14 = arith.constant 0 : i32
    %17 = arith.cmpi eq, %arg1, %c0_i32_14 : i32
    %18 = arith.extui %17 : i1 to i32
    %c0_i32_15 = arith.constant 0 : i32
    %19 = arith.cmpi ne, %18, %c0_i32_15 : i32
    scf.if %19 {
      %c0_16 = arith.constant 0 : index
      %c0_17 = arith.constant 0 : index
      %20 = vector.load %arg11[%c0_16, %c0_17] : memref<8x128xf32, #tpu.memory_space<vmem>>, vector<8x128xf32>
      %c0_18 = arith.constant 0 : index
      %c0_19 = arith.constant 0 : index
      %21 = vector.load %arg8[%c0_18, %c0_19] : memref<1x128xf32, #tpu.memory_space<vmem>>, vector<1x128xf32>
      %22 = vector.broadcast %21 : vector<1x128xf32> to vector<8x128xf32>
      %23 = arith.addf %20, %22 : vector<8x128xf32>
      %c0_20 = arith.constant 0 : index
      %c0_21 = arith.constant 0 : index
      %24 = vector.load %arg9[%c0_20, %c0_21] : memref<8x128xf32, #tpu.memory_space<vmem>>, vector<8x128xf32>
      tpu.vector_store %arg9[%c0_20, %c0_21], %23 {strides = array<i32>} : memref<8x128xf32, #tpu.memory_space<vmem>>, vector<8x128xf32>,
    } else {
    }
    return
  }
  func.func @transform_0(%arg0: i32, %arg1: i32) -> (i32, i32) {
    %c0_i32 = arith.constant 0 : i32
    %c0_i32_0 = arith.constant 0 : i32
    return %arg0, %c0_i32 : i32, i32
  }
  func.func @transform_1(%arg0: i32, %arg1: i32) -> (i32, i32) {
    %c0_i32 = arith.constant 0 : i32
    %c0_i32_0 = arith.constant 0 : i32
    %c0_i32_1 = arith.constant 0 : i32
    return %c0_i32, %c0_i32_0 : i32, i32
  }
  func.func @transform_2(%arg0: i32, %arg1: i32) -> (i32, i32) {
    %c0_i32 = arith.constant 0 : i32
    %c0_i32_0 = arith.constant 0 : i32
    %c0_i32_1 = arith.constant 0 : i32
    return %c0_i32, %c0_i32_0 : i32, i32
  }
  func.func @transform_3(%arg0: i32, %arg1: i32) -> (i32, i32) {
    %c0_i32 = arith.constant 0 : i32
    %c0_i32_0 = arith.constant 0 : i32
    return %c0_i32, %arg1 : i32, i32
  }
  func.func @transform_4(%arg0: i32, %arg1: i32) -> (i32, i32) {
    %c0_i32 = arith.constant 0 : i32
    %c0_i32_0 = arith.constant 0 : i32
    return %c0_i32, %arg1 : i32, i32
  }
  func.func @transform_5(%arg0: i32, %arg1: i32) -> (i32, i32) {
    %c0_i32 = arith.constant 0 : i32
    %c0_i32_0 = arith.constant 0 : i32
    return %arg1, %c0_i32 : i32, i32
  }
  func.func @transform_6(%arg0: i32, %arg1: i32) -> (i32, i32) {
    %c0_i32 = arith.constant 0 : i32
    %c0_i32_0 = arith.constant 0 : i32
    %c0_i32_1 = arith.constant 0 : i32
    return %c0_i32, %c0_i32_0 : i32, i32
  }
  func.func @transform_7(%arg0: i32, %arg1: i32) -> (i32, i32) {
    %c0_i32 = arith.constant 0 : i32
    %c0_i32_0 = arith.constant 0 : i32
    return %arg0, %c0_i32 : i32, i32
  }
}

</mosaic_0001>

<llo_original>
// kernel: tpu_custom_call.1
$region0: #{tpu_custom_call.1}
  #allocation0 [shape = 'u32[]', space=smem, size = 0x4, offset = 0x4, fixed_abs, tag = 'smem constant byte address 0x4 - core index']
  #allocation1 [shape = 'u32[144,128]{1,0:T(1,128)}', space=vmem, size = 0x12000, scoped, tag = 'internal scratch']
  #allocation2 [shape = 'bf16[8,128]{1,0:T(8,128)(2,1)}', space=vmem, size = 0x800, scoped, tag = 'scratch operand']
  #allocation3 [shape = 'f32[8,128]{1,0:T(8,128)}', space=vmem, size = 0x1000, scoped, tag = 'scratch operand']
  %s0 = inlined_call_operand.hbm [shape: f32[16,128], index: 0, kind: input, shape index: {}]
  %s1 = inlined_call_operand.vmem [shape: f32[1,128], index: 1, kind: input, shape index: {}]
  %s2 = inlined_call_operand.vmem [shape: f32[1,128], index: 2, kind: input, shape index: {}]
  %s3 = inlined_call_operand.hbm [shape: bf16[128,128], index: 3, kind: input, shape index: {}]
  %s4 = inlined_call_operand.vmem [shape: f32[1,128], index: 4, kind: input, shape index: {}]
  %s5 = inlined_call_operand.hbm [shape: bf16[128,128], index: 5, kind: input, shape index: {}]
  %s6 = inlined_call_operand.vmem [shape: f32[1,128], index: 6, kind: input, shape index: {}]
  %s7 = inlined_call_operand.hbm [shape: f32[16,128], index: 7, kind: output, shape index: {}]
  %s8 = sld [smem:[#allocation0]]
  $region81: #{tpu_custom_call.1} parent=0
    _
  %s10 = ssub.s32 1, %s8
  %s11 = scalar_select 0, %s10, %s8
  $region1: #{tpu_custom_call.1} parent=0
    #allocation4 [shape = 'u8[8192]{0}', space=vmem, size = 0x2000, scoped, tag = 'input window, operand 0']
    #allocation5 [shape = 's32[2]{0}', space=sflag, size = 0x8, scoped, tag = 'scoped memory for tpu_custom_call.1']
    #allocation6 [shape = 's32[2]{0}', space=sflag, size = 0x8, scoped, tag = 'scoped memory for tpu_custom_call.1']
    #allocation7 [shape = 'u8[32768]{0}', space=vmem, size = 0x8000, scoped, tag = 'input window, operand 3, single buffered']
    #allocation8 [shape = 's32[1]{0}', space=sflag, size = 0x4, scoped, tag = 'scoped memory for tpu_custom_call.1']
    #allocation9 [shape = 'u8[32768]{0}', space=vmem, size = 0x8000, scoped, tag = 'input window, operand 5, single buffered']
    #allocation10 [shape = 'u8[8192]{0}', space=vmem, size = 0x2000, scoped, tag = 'output window, operand 0']
    %12 = vsyncpa [#allocation5], 0
    %s13 = scalar_lea.sflag [#allocation5], 1
    %14 = vsyncpa %s13, 0
    %15 = vsyncpa [#allocation8], 0
    %16 = vsyncpa [#allocation6], 0
    %s17 = scalar_lea.sflag [#allocation6], 1
    %18 = vsyncpa %s17, 0
    loop: start=0, step=1, limit=4
    $region2: #{tpu_custom_call.1} parent=1 // loop_pre_header
      _
    $region3: #{tpu_custom_call.1} parent=1 // loop_header
      %s20 = sphi 0, %s24
      %p21 = scmp.ge.s32.totalorder %s20, 4
      %s27 = sphi 0, %s39
      %s28 = sphi 0, %s35
      %s29 = sphi 0, %s27
      %s30 = sphi 0, %s28
      %s31 = sphi 0, %s29
      %s32 = sphi 0, %s30
      %s42 = sphi 0, %s44
      %s45 = sphi 0, %s42
      %s46 = sphi 0, %s45
      %s62 = sphi 0, %s46
      %s66 = sphi 0, %s66
      %s68 = sphi 0, %s66
      %s69 = sphi 0, %s68
      %s83 = sphi 0, %s69
      %s87 = sphi 0, %s87
      %s89 = sphi 0, %s87
      %s90 = sphi 0, %s89
      %s104 = sphi 0, %s90
      %s110 = sphi 0, %s112
      %s113 = sphi 0, %s110
      %s114 = sphi 0, %s113
      %s130 = sphi 0, %s114
      %s136 = sphi 0, %s138
      %s139 = sphi 0, %s136
      %s140 = sphi 0, %s139
      %s156 = sphi 0, %s140
      %s162 = sphi 0, %s164
      %s165 = sphi 0, %s162
      %s166 = sphi 0, %s165
      %s182 = sphi 0, %s166
      %s186 = sphi 0, %s186
      %s188 = sphi 0, %s186
      %s189 = sphi 0, %s188
      %s203 = sphi 0, %s189
      %s209 = sphi 0, %s211
      %s212 = sphi 0, %s209
      %s213 = sphi 0, %s212
      %s229 = sphi 0, %s213
    $region4: #{tpu_custom_call.1} parent=1 // loop_header_branch
      %23 = sbr.rel (%p21) target = $region8
    $region5: #{tpu_custom_call.1} parent=1 // loop_body
      %s25 = ssub.s32 %s20, 1
      %s26 = ssub.s32 %s20, 2
      %s33 = sadd.s32 1, %s28
      %p34 = scmp.ge.s32.totalorder %s33, 1
      %s35 = scalar_select %p34, 0, %s33
      %s36 = sadd.s32 1, %s27
      %s37 = scalar_select %p34, %s36, %s27
      %p38 = scmp.ge.s32.totalorder %s37, 2
      %s39 = scalar_select %p38, 0, %s37
      %s40 = ssub.s32 %s27, %s39
      %p41 = scmp.eq.s32.totalorder %s40, 0
      %s43 = sadd.s32 %s42, 1
      %s44 = scalar_select %p41, %s42, %s43
      %p47 = pneg %p41
      %p48 = scmp.eq.s32.totalorder %s20, 1
      %p49 = por %p47, %p48
      %p50 = scmp.ne.s32.totalorder %s42, %s45
      %p51 = scmp.eq.s32.totalorder %s20, 0
      %p52 = por %p50, %p51
      %p53 = scmp.ne.s32.totalorder %s42, %s45
      %p54 = scmp.eq.s32.totalorder %s25, 1
      %p55 = por %p53, %p54
      %p56 = scmp.ne.s32.totalorder %s45, %s46
      %p57 = scmp.eq.s32.totalorder %s25, 0
      %p58 = por %p56, %p57
      %p59 = scmp.ne.s32.totalorder %s45, %s46
      %p60 = scmp.eq.s32.totalorder %s26, 1
      %p61 = por %p59, %p60
      %p63 = scmp.ne.s32.totalorder %s46, %s62
      %p64 = scmp.eq.s32.totalorder %s26, 0
      %p65 = por %p63, %p64
      %s67 = sadd.s32 %s66, 1
      %p70 = scmp.eq.s32.totalorder %s20, 1
      %p71 = scmp.ne.s32.totalorder %s66, %s68
      %p72 = scmp.eq.s32.totalorder %s20, 0
      %p73 = por %p71, %p72
      %p74 = scmp.ne.s32.totalorder %s66, %s68
      %p75 = scmp.eq.s32.totalorder %s25, 1
      %p76 = por %p74, %p75
      %p77 = scmp.ne.s32.totalorder %s68, %s69
      %p78 = scmp.eq.s32.totalorder %s25, 0
      %p79 = por %p77, %p78
      %p80 = scmp.ne.s32.totalorder %s68, %s69
      %p81 = scmp.eq.s32.totalorder %s26, 1
      %p82 = por %p80, %p81
      %p84 = scmp.ne.s32.totalorder %s69, %s83
      %p85 = scmp.eq.s32.totalorder %s26, 0
      %p86 = por %p84, %p85
      %s88 = sadd.s32 %s87, 1
      %p91 = scmp.eq.s32.totalorder %s20, 1
      %p92 = scmp.ne.s32.totalorder %s87, %s89
      %p93 = scmp.eq.s32.totalorder %s20, 0
      %p94 = por %p92, %p93
      %p95 = scmp.ne.s32.totalorder %s87, %s89
      %p96 = scmp.eq.s32.totalorder %s25, 1
      %p97 = por %p95, %p96
      %p98 = scmp.ne.s32.totalorder %s89, %s90
      %p99 = scmp.eq.s32.totalorder %s25, 0
      %p100 = por %p98, %p99
      %p101 = scmp.ne.s32.totalorder %s89, %s90
      %p102 = scmp.eq.s32.totalorder %s26, 1
      %p103 = por %p101, %p102
      %p105 = scmp.ne.s32.totalorder %s90, %s104
      %p106 = scmp.eq.s32.totalorder %s26, 0
      %p107 = por %p105, %p106
      %s108 = ssub.s32 %s28, %s35
      %p109 = scmp.eq.s32.totalorder %s108, 0
      %s111 = sadd.s32 %s110, 1
      %s112 = scalar_select %p109, %s110, %s111
      %p115 = pneg %p109
      %p116 = scmp.eq.s32.totalorder %s20, 1
      %p117 = por %p115, %p116
      %p118 = scmp.ne.s32.totalorder %s110, %s113
      %p119 = scmp.eq.s32.totalorder %s20, 0
      %p120 = por %p118, %p119
      %p121 = scmp.ne.s32.totalorder %s110, %s113
      %p122 = scmp.eq.s32.totalorder %s25, 1
      %p123 = por %p121, %p122
      %p124 = scmp.ne.s32.totalorder %s113, %s114
      %p125 = scmp.eq.s32.totalorder %s25, 0
      %p126 = por %p124, %p125
      %p127 = scmp.ne.s32.totalorder %s113, %s114
      %p128 = scmp.eq.s32.totalorder %s26, 1
      %p129 = por %p127, %p128
      %p131 = scmp.ne.s32.totalorder %s114, %s130
      %p132 = scmp.eq.s32.totalorder %s26, 0
      %p133 = por %p131, %p132
      %s134 = ssub.s32 %s28, %s35
      %p135 = scmp.eq.s32.totalorder %s134, 0
      %s137 = sadd.s32 %s136, 1
      %s138 = scalar_select %p135, %s136, %s137
      %p141 = pneg %p135
      %p142 = scmp.eq.s32.totalorder %s20, 1
      %p143 = por %p141, %p142
      %p144 = scmp.ne.s32.totalorder %s136, %s139
      %p145 = scmp.eq.s32.totalorder %s20, 0
      %p146 = por %p144, %p145
      %p147 = scmp.ne.s32.totalorder %s136, %s139
      %p148 = scmp.eq.s32.totalorder %s25, 1
      %p149 = por %p147, %p148
      %p150 = scmp.ne.s32.totalorder %s139, %s140
      %p151 = scmp.eq.s32.totalorder %s25, 0
      %p152 = por %p150, %p151
      %p153 = scmp.ne.s32.totalorder %s139, %s140
      %p154 = scmp.eq.s32.totalorder %s26, 1
      %p155 = por %p153, %p154
      %p157 = scmp.ne.s32.totalorder %s140, %s156
      %p158 = scmp.eq.s32.totalorder %s26, 0
      %p159 = por %p157, %p158
      %s160 = ssub.s32 %s28, %s35
      %p161 = scmp.eq.s32.totalorder %s160, 0
      %s163 = sadd.s32 %s162, 1
      %s164 = scalar_select %p161, %s162, %s163
      %p167 = pneg %p161
      %p168 = scmp.eq.s32.totalorder %s20, 1
      %p169 = por %p167, %p168
      %p170 = scmp.ne.s32.totalorder %s162, %s165
      %p171 = scmp.eq.s32.totalorder %s20, 0
      %p172 = por %p170, %p171
      %p173 = scmp.ne.s32.totalorder %s162, %s165
      %p174 = scmp.eq.s32.totalorder %s25, 1
      %p175 = por %p173, %p174
      %p176 = scmp.ne.s32.totalorder %s165, %s166
      %p177 = scmp.eq.s32.totalorder %s25, 0
      %p178 = por %p176, %p177
      %p179 = scmp.ne.s32.totalorder %s165, %s166
      %p180 = scmp.eq.s32.totalorder %s26, 1
      %p181 = por %p179, %p180
      %p183 = scmp.ne.s32.totalorder %s166, %s182
      %p184 = scmp.eq.s32.totalorder %s26, 0
      %p185 = por %p183, %p184
      %s187 = sadd.s32 %s186, 1
      %p190 = scmp.eq.s32.totalorder %s20, 1
      %p191 = scmp.ne.s32.totalorder %s186, %s188
      %p192 = scmp.eq.s32.totalorder %s20, 0
      %p193 = por %p191, %p192
      %p194 = scmp.ne.s32.totalorder %s186, %s188
      %p195 = scmp.eq.s32.totalorder %s25, 1
      %p196 = por %p194, %p195
      %p197 = scmp.ne.s32.totalorder %s188, %s189
      %p198 = scmp.eq.s32.totalorder %s25, 0
      %p199 = por %p197, %p198
      %p200 = scmp.ne.s32.totalorder %s188, %s189
      %p201 = scmp.eq.s32.totalorder %s26, 1
      %p202 = por %p200, %p201
      %p204 = scmp.ne.s32.totalorder %s189, %s203
      %p205 = scmp.eq.s32.totalorder %s26, 0
      %p206 = por %p204, %p205
      %s207 = ssub.s32 %s27, %s39
      %p208 = scmp.eq.s32.totalorder %s207, 0
      %s210 = sadd.s32 %s209, 1
      %s211 = scalar_select %p208, %s209, %s210
      %p214 = pneg %p208
      %p215 = scmp.eq.s32.totalorder %s20, 1
      %p216 = por %p214, %p215
      %p217 = scmp.ne.s32.totalorder %s209, %s212
      %p218 = scmp.eq.s32.totalorder %s20, 0
      %p219 = por %p217, %p218
      %p220 = scmp.ne.s32.totalorder %s209, %s212
      %p221 = scmp.eq.s32.totalorder %s25, 1
      %p222 = por %p220, %p221
      %p223 = scmp.ne.s32.totalorder %s212, %s213
      %p224 = scmp.eq.s32.totalorder %s25, 0
      %p225 = por %p223, %p224
      %p226 = scmp.ne.s32.totalorder %s212, %s213
      %p227 = scmp.eq.s32.totalorder %s26, 1
      %p228 = por %p226, %p227
      %p230 = scmp.ne.s32.totalorder %s213, %s229
      %p231 = scmp.eq.s32.totalorder %s26, 0
      %p232 = por %p230, %p231
      %p233 = scmp.le.s32.totalorder 1, %s20
      %p234 = scmp.lt.s32.totalorder %s20, 3
      %p235 = pnand %p233, %p234
      %p236 = pneg %p235
      // Predicated region
      $region9: #{tpu_custom_call.1} parent=5 // pred_check
        _
      $region10: #{tpu_custom_call.1} parent=5 // pred_check_branch
        %238 = sbr.rel (%p235) target = $region12
      $region11: #{tpu_custom_call.1} parent=5 // pred_region
        %s239 = ssub.s32 %s20, 1
        // Predicated region
        $region13: #{tpu_custom_call.1} parent=11 // pred_check
          %p240 = pneg %p79
        $region14: #{tpu_custom_call.1} parent=11 // pred_check_branch
          %242 = sbr.rel (%p240) target = $region16
        $region15: #{tpu_custom_call.1} parent=11 // pred_region
          _
        $region16: #{tpu_custom_call.1} parent=11 // pred_fallthru
          _
        // Predicated region
        $region17: #{tpu_custom_call.1} parent=11 // pred_check
          %p243 = pneg %p100
        $region18: #{tpu_custom_call.1} parent=11 // pred_check_branch
          %245 = sbr.rel (%p243) target = $region20
        $region19: #{tpu_custom_call.1} parent=11 // pred_region
          _
        $region20: #{tpu_custom_call.1} parent=11 // pred_fallthru
          _
        // Predicated region
        $region21: #{tpu_custom_call.1} parent=11 // pred_check
          %p246 = pneg %p126
        $region22: #{tpu_custom_call.1} parent=11 // pred_check_branch
          %248 = sbr.rel (%p246) target = $region24
        $region23: #{tpu_custom_call.1} parent=11 // pred_region
          %s250 = ssub.s32 1024, 1024
          %251 = vsyncadd [#allocation8], %s250
          %s252 = smul.addr %s30, 64
          %s253 = scalar_lea.hbm %s3, %s252
          %s254 = sshll.u32 [#allocation7], 4
          %s255 = int_to_ptr.vmem [resolvable:$true] %s254
          %260 = dma.hbm_to_vmem [thread:$0]  %s253, 1024, %s255, [#allocation8], 64, 64, 4
        $region24: #{tpu_custom_call.1} parent=11 // pred_fallthru
          _
        // Predicated region
        $region25: #{tpu_custom_call.1} parent=11 // pred_check
          %p261 = pneg %p152
        $region26: #{tpu_custom_call.1} parent=11 // pred_check_branch
          %263 = sbr.rel (%p261) target = $region28
        $region27: #{tpu_custom_call.1} parent=11 // pred_region
          %p264 = scmp.lt.s32.totalorder %s30, 0
          %s265 = scalar_select %p264, %s30, 0
          %s266 = scalar_lea.vmem %s4, %s265
        $region28: #{tpu_custom_call.1} parent=11 // pred_fallthru
          _
        // Predicated region
        $region29: #{tpu_custom_call.1} parent=11 // pred_check
          %p267 = pneg %p178
        $region30: #{tpu_custom_call.1} parent=11 // pred_check_branch
          %269 = sbr.rel (%p267) target = $region32
        $region31: #{tpu_custom_call.1} parent=11 // pred_region
          %s270 = smul.u32 16, %s30
          %s272 = ssub.s32 1024, 1024
          %273 = vsyncadd [#allocation8], %s272
          %s274 = smul.addr %s270, 64
          %s275 = scalar_lea.hbm %s5, %s274
          %s276 = sshll.u32 [#allocation9], 4
          %s277 = int_to_ptr.vmem [resolvable:$true] %s276
          %282 = dma.hbm_to_vmem [thread:$0]  %s275, 1024, %s277, [#allocation8], 64, 64, 4
        $region32: #{tpu_custom_call.1} parent=11 // pred_fallthru
          _
        // Predicated region
        $region33: #{tpu_custom_call.1} parent=11 // pred_check
          %p283 = pneg %p199
        $region34: #{tpu_custom_call.1} parent=11 // pred_check_branch
          %285 = sbr.rel (%p283) target = $region36
        $region35: #{tpu_custom_call.1} parent=11 // pred_region
          _
        $region36: #{tpu_custom_call.1} parent=11 // pred_fallthru
          _
      $region12: #{tpu_custom_call.1} parent=5 // pred_fallthru
        _
      %p286 = scmp.lt.s32.totalorder %s20, 2
      // Predicated region
      $region37: #{tpu_custom_call.1} parent=5 // pred_check
        %p287 = pneg %p286
      $region38: #{tpu_custom_call.1} parent=5 // pred_check_branch
        %289 = sbr.rel (%p287) target = $region40
      $region39: #{tpu_custom_call.1} parent=5 // pred_region
        // Predicated region
        $region41: #{tpu_custom_call.1} parent=39 // pred_check
          %p290 = pneg %p52
        $region42: #{tpu_custom_call.1} parent=39 // pred_check_branch
          %292 = sbr.rel (%p290) target = $region44
        $region43: #{tpu_custom_call.1} parent=39 // pred_region
          %s293 = sand.u32 %s42, 1
          %s294 = scalar_lea.sflag [#allocation5], %s293
          %s295 = sand.u32 %s42, 1
          %s296 = smul.addr %s295, 8
          %s297 = scalar_lea.vmem [#allocation4], %s296
          %s299 = ssub.s32 128, 128
          %300 = vsyncadd %s294, %s299
          %s301 = smul.addr %s27, 128
          %s302 = scalar_lea.hbm %s0, %s301
          %s304 = sshll.u32 %s297, 4
          %s305 = int_to_ptr.vmem [resolvable:$true] %s304
          %307 = dma.hbm_to_vmem [thread:$0]  %s302, 128, %s305, %s294
        $region44: #{tpu_custom_call.1} parent=39 // pred_fallthru
          _
      $region40: #{tpu_custom_call.1} parent=5 // pred_fallthru
        _
      %p308 = scmp.le.s32.totalorder 1, %s20
      %p309 = scmp.lt.s32.totalorder %s20, 3
      %p310 = pnand %p308, %p309
      %p311 = pneg %p310
      // Predicated region
      $region45: #{tpu_custom_call.1} parent=5 // pred_check
        _
      $region46: #{tpu_custom_call.1} parent=5 // pred_check_branch
        %313 = sbr.rel (%p310) target = $region48
      $region47: #{tpu_custom_call.1} parent=5 // pred_region
        %s314 = ssub.s32 %s20, 1
        %s315 = sand.u32 %s45, 1
        %s316 = scalar_lea.sflag [#allocation5], %s315
        %s317 = sand.u32 %s45, 1
        %s318 = smul.addr %s317, 8
        %s319 = scalar_lea.vmem [#allocation4], %s318
        // Predicated region
        $region49: #{tpu_custom_call.1} parent=47 // pred_check
          %p320 = pneg %p58
        $region50: #{tpu_custom_call.1} parent=47 // pred_check_branch
          %322 = sbr.rel (%p320) target = $region52
        $region51: #{tpu_custom_call.1} parent=47 // pred_region
          %323 = dma.done %s316, 128
        $region52: #{tpu_custom_call.1} parent=47 // pred_fallthru
          _
        // Predicated region
        $region53: #{tpu_custom_call.1} parent=47 // pred_check
          %p324 = pneg %p126
        $region54: #{tpu_custom_call.1} parent=47 // pred_check_branch
          %326 = sbr.rel (%p324) target = $region56
        $region55: #{tpu_custom_call.1} parent=47 // pred_region
          %327 = dma.done [#allocation8], 1024
        $region56: #{tpu_custom_call.1} parent=47 // pred_fallthru
          _
        // Predicated region
        $region57: #{tpu_custom_call.1} parent=47 // pred_check
          %p328 = pneg %p178
        $region58: #{tpu_custom_call.1} parent=47 // pred_check_branch
          %330 = sbr.rel (%p328) target = $region60
        $region59: #{tpu_custom_call.1} parent=47 // pred_region
          %331 = dma.done [#allocation8], 1024
        $region60: #{tpu_custom_call.1} parent=47 // pred_fallthru
          _
        %s332 = sand.u32 %s45, 1
        %s333 = scalar_lea.sflag [#allocation5], %s332
        %s334 = sand.u32 %s45, 1
        %s335 = smul.addr %s334, 8
        %s336 = scalar_lea.vmem [#allocation4], %s335
        %p337 = pneg %p58
        %p338 = pneg %p55
        %p339 = pneg %p79
        %p340 = pneg %p76
        %p341 = pneg %p100
        %p342 = pneg %p97
        %p343 = pneg %p126
        %p344 = pneg %p123
        %p345 = scmp.lt.s32.totalorder %s30, 0
        %s346 = scalar_select %p345, %s30, 0
        %s347 = scalar_lea.vmem %s4, %s346
        %p348 = pneg %p152
        %p349 = pneg %p149
        %p350 = pneg %p178
        %p351 = pneg %p175
        %p352 = pneg %p199
        %p353 = pneg %p196
        %p354 = pneg %p225
        %p355 = pneg %p222
        %s356 = sand.u32 %s212, 1
        %s357 = scalar_lea.sflag [#allocation6], %s356
        %s358 = sand.u32 %s212, 1
        %s359 = smul.addr %s358, 8
        %s360 = scalar_lea.vmem [#allocation10], %s359
        %p361 = scmp.lt.s32.totalorder %s30, 0
        %s362 = scalar_select %p361, %s30, 0
        %s363 = scalar_lea.vmem %s4, %s362
        %s364 = smul.u32 16, %s30
        %p366 = scmp.eq.s32.totalorder %s30, 0
        // Predicated region
        $region61: #{tpu_custom_call.1} parent=47 // pred_check
          %p367 = pneg %p366
        $region62: #{tpu_custom_call.1} parent=47 // pred_check_branch
          %369 = sbr.rel (%p367) target = $region64
        $region63: #{tpu_custom_call.1} parent=47 // pred_region
          %v370 = vld [vmem:[%s319] sm:$0xff]
          %371 = vadd.xlane.f32.xlu0 %v370
          %v372 = vpop.xlane.xlu0 %371
          %v373 = vmul.f32 %v372, 0.03125
          %v374 = vlaneseq
          %v375 = vand.u32 %v374, 127
          %vm376 = vcmp.lt.s32.totalorder %v375, 32
          %v377 = vsub.f32 %v370, %v373
          %v378 = vsel %vm376, %v377, 0.0
          %v379 = vmul.f32 %v378, %v378
          %380 = vadd.xlane.f32.xlu0 %v379
          %v381 = vpop.xlane.xlu0 %380
          %v382 = vmul.f32 %v381, 0.03125
          %v383 = vadd.f32 %v382, 1e-05
          %v384 = vrsqrt.pop %v383
          %v385 = vmul.f32 %v377, %v384
          %v386 = vld [vmem:[%s1] sm:$0x1]
          %v388 = vlaneseq
          %v389 = vshrl.u32 %v388, 7
          %v390 = vsub.s32 0, %v389
          %v391 = vrot.slane %v386, %v390
          %v393 = vmul.f32 %v385, %v391
          %v394 = vld [vmem:[%s2] sm:$0x1]
          %v396 = vlaneseq
          %v397 = vshrl.u32 %v396, 7
          %v398 = vsub.s32 0, %v397
          %v399 = vrot.slane %v394, %v398
          %v401 = vadd.f32 %v393, %v399
          %v402 = vpack.c.bf16 %v401, %v401
          %403 = vst [vmem:[#allocation2] sm:$0xf] %v402
          %404 = vst [vmem:[#allocation3] sm:$0xff] %v370
        $region64: #{tpu_custom_call.1} parent=47 // pred_fallthru
          _
        %v405 = vld [vmem:[#allocation2] sm:$0xf]
        %v406 = vld [vmem:[#allocation7] sm:$0xf]
        %v407 = vld [vmem:[#allocation7 + $0x4] sm:$0xf]
        %v408 = vld [vmem:[#allocation7 + $0x8] sm:$0xf]
        %v409 = vld [vmem:[#allocation7 + $0xc] sm:$0xf]
        %v410 = vld [vmem:[#allocation7 + $0x10] sm:$0xf]
        %v411 = vld [vmem:[#allocation7 + $0x14] sm:$0xf]
        %v412 = vld [vmem:[#allocation7 + $0x18] sm:$0xf]
        %v413 = vld [vmem:[#allocation7 + $0x1c] sm:$0xf]
        %v414 = vld [vmem:[#allocation7 + $0x20] sm:$0xf]
        %v415 = vld [vmem:[#allocation7 + $0x24] sm:$0xf]
        %v416 = vld [vmem:[#allocation7 + $0x28] sm:$0xf]
        %v417 = vld [vmem:[#allocation7 + $0x2c] sm:$0xf]
        %v418 = vld [vmem:[#allocation7 + $0x30] sm:$0xf]
        %v419 = vld [vmem:[#allocation7 + $0x34] sm:$0xf]
        %v420 = vld [vmem:[#allocation7 + $0x38] sm:$0xf]
        %v421 = vld [vmem:[#allocation7 + $0x3c] sm:$0xf]
        %v422 = vld [vmem:[%s363] sm:$0x1]
        %v424 = vlaneseq
        %v425 = vshrl.u32 %v424, 7
        %v426 = vsub.s32 0, %v425
        %v427 = vrot.slane %v422, %v426
        %v445 = vunpack.c.l.b16 %v406
        %v446 = vunpack.c.l.b16 %v407
        %v447 = vunpack.c.l.b16 %v408
        %v448 = vunpack.c.l.b16 %v409
        %v449 = vunpack.c.l.b16 %v410
        %v450 = vunpack.c.l.b16 %v411
        %v451 = vunpack.c.l.b16 %v412
        %v452 = vunpack.c.l.b16 %v413
        %v453 = vunpack.c.l.b16 %v414
        %v454 = vunpack.c.l.b16 %v415
        %v455 = vunpack.c.l.b16 %v416
        %v456 = vunpack.c.l.b16 %v417
        %v457 = vunpack.c.l.b16 %v418
        %v458 = vunpack.c.l.b16 %v419
        %v459 = vunpack.c.l.b16 %v420
        %v460 = vunpack.c.l.b16 %v421
        %v461 = vpack.c.b16 %v446, %v445
        %v462 = vpack.c.b16 %v448, %v447
        %v463 = vpack.c.b16 %v450, %v449
        %v464 = vpack.c.b16 %v452, %v451
        %v465 = vpack.c.b16 %v454, %v453
        %v466 = vpack.c.b16 %v456, %v455
        %v467 = vpack.c.b16 %v458, %v457
        %v468 = vpack.c.b16 %v460, %v459
        %477 = vmatprep.subr.bf16.mxu0 0
        %478 = vmatpush1.bf16.msra.mxu0 %v461
        %479 = vmatprep.subr.bf16.mxu0 0
        %480 = vmatpush1.bf16.msra.mxu0 %v462
        %481 = vmatprep.subr.bf16.mxu0 0
        %482 = vmatpush1.bf16.msra.mxu0 %v463
        %483 = vmatprep.subr.bf16.mxu0 0
        %484 = vmatpush1.bf16.msra.mxu0 %v464
        %485 = vmatprep.subr.bf16.mxu0 0
        %486 = vmatpush1.bf16.msra.mxu0 %v465
        %487 = vmatprep.subr.bf16.mxu0 0
        %488 = vmatpush1.bf16.msra.mxu0 %v466
        %489 = vmatprep.subr.bf16.mxu0 0
        %490 = vmatpush1.bf16.msra.mxu0 %v467
        %491 = vmatprep.subr.bf16.mxu0 0
        %492 = vmatpush1.bf16.msra.mxu0 %v468
        %493 = vmatprep.subr.bf16.mxu0 0
        %494 = vmatpush1.bf16.msra.mxu0 0
        %495 = vmatprep.subr.bf16.mxu0 0
        %496 = vmatpush1.bf16.msra.mxu0 0
        %497 = vmatprep.subr.bf16.mxu0 0
        %498 = vmatpush1.bf16.msra.mxu0 0
        %499 = vmatprep.subr.bf16.mxu0 0
        %500 = vmatpush1.bf16.msra.mxu0 0
        %501 = vmatprep.subr.bf16.mxu0 0
        %502 = vmatpush1.bf16.msra.mxu0 0
        %503 = vmatprep.subr.bf16.mxu0 0
        %504 = vmatpush1.bf16.msra.mxu0 0
        %505 = vmatprep.subr.bf16.mxu0 0
        %506 = vmatpush1.bf16.msra.mxu0 0
        %507 = vmatprep.subr.bf16.mxu0 0
        %508 = vmatpush1.bf16.msra.mxu0 0
        %509 = vmatprep.mubr.bf16.mxu0 0
        %510 = vmatmul.mubr.bf16.gmra.mrb[0].mxu0 %v405
        %v511 = vpop.f32.mrb[0].mxu0
        %v512 = vadd.f32 %v427, %v511
        %v513 = vpop.f32.mrb[0].mxu0
        %v514 = vpop.f32.mrb[0].mxu0
        %v515 = vpop.f32.mrb[0].mxu0
        %516 = vdwg.mxu0
        %v517 = vmax.f32 %v512, 0.0
        %v518 = vld [vmem:[#allocation3] sm:$0xff]
        %v519 = vpack.c.bf16 %v517, %v517
        %v520 = vld [vmem:[#allocation9] sm:$0xf]
        %v521 = vld [vmem:[#allocation9 + $0x4] sm:$0xf]
        %v522 = vld [vmem:[#allocation9 + $0x8] sm:$0xf]
        %v523 = vld [vmem:[#allocation9 + $0xc] sm:$0xf]
        %v524 = vld [vmem:[#allocation9 + $0x10] sm:$0xf]
        %v525 = vld [vmem:[#allocation9 + $0x14] sm:$0xf]
        %v526 = vld [vmem:[#allocation9 + $0x18] sm:$0xf]
        %v527 = vld [vmem:[#allocation9 + $0x1c] sm:$0xf]
        %v528 = vld [vmem:[#allocation9 + $0x20] sm:$0xf]
        %v529 = vld [vmem:[#allocation9 + $0x24] sm:$0xf]
        %v530 = vld [vmem:[#allocation9 + $0x28] sm:$0xf]
        %v531 = vld [vmem:[#allocation9 + $0x2c] sm:$0xf]
        %v532 = vld [vmem:[#allocation9 + $0x30] sm:$0xf]
        %v533 = vld [vmem:[#allocation9 + $0x34] sm:$0xf]
        %v534 = vld [vmem:[#allocation9 + $0x38] sm:$0xf]
        %v535 = vld [vmem:[#allocation9 + $0x3c] sm:$0xf]
        %v552 = vunpack.c.l.b16 %v520
        %v553 = vunpack.c.l.b16 %v521
        %v554 = vunpack.c.l.b16 %v522
        %v555 = vunpack.c.l.b16 %v523
        %v556 = vunpack.c.l.b16 %v524
        %v557 = vunpack.c.l.b16 %v525
        %v558 = vunpack.c.l.b16 %v526
        %v559 = vunpack.c.l.b16 %v527
        %v560 = vunpack.c.l.b16 %v528
        %v561 = vunpack.c.l.b16 %v529
        %v562 = vunpack.c.l.b16 %v530
        %v563 = vunpack.c.l.b16 %v531
        %v564 = vunpack.c.l.b16 %v532
        %v565 = vunpack.c.l.b16 %v533
        %v566 = vunpack.c.l.b16 %v534
        %v567 = vunpack.c.l.b16 %v535
        %v568 = vpack.c.b16 %v553, %v552
        %v569 = vpack.c.b16 %v555, %v554
        %v570 = vpack.c.b16 %v557, %v556
        %v571 = vpack.c.b16 %v559, %v558
        %v572 = vpack.c.b16 %v561, %v560
        %v573 = vpack.c.b16 %v563, %v562
        %v574 = vpack.c.b16 %v565, %v564
        %v575 = vpack.c.b16 %v567, %v566
        %584 = vmatprep.subr.bf16.mxu0 0
        %585 = vmatpush1.bf16.msra.mxu0 %v568
        %586 = vmatprep.subr.bf16.mxu0 0
        %587 = vmatpush1.bf16.msra.mxu0 %v569
        %588 = vmatprep.subr.bf16.mxu0 0
        %589 = vmatpush1.bf16.msra.mxu0 %v570
        %590 = vmatprep.subr.bf16.mxu0 0
        %591 = vmatpush1.bf16.msra.mxu0 %v571
        %592 = vmatprep.subr.bf16.mxu0 0
        %593 = vmatpush1.bf16.msra.mxu0 %v572
        %594 = vmatprep.subr.bf16.mxu0 0
        %595 = vmatpush1.bf16.msra.mxu0 %v573
        %596 = vmatprep.subr.bf16.mxu0 0
        %597 = vmatpush1.bf16.msra.mxu0 %v574
        %598 = vmatprep.subr.bf16.mxu0 0
        %599 = vmatpush1.bf16.msra.mxu0 %v575
        %600 = vmatprep.subr.bf16.mxu0 0
        %601 = vmatpush1.bf16.msra.mxu0 0
        %602 = vmatprep.subr.bf16.mxu0 0
        %603 = vmatpush1.bf16.msra.mxu0 0
        %604 = vmatprep.subr.bf16.mxu0 0
        %605 = vmatpush1.bf16.msra.mxu0 0
        %606 = vmatprep.subr.bf16.mxu0 0
        %607 = vmatpush1.bf16.msra.mxu0 0
        %608 = vmatprep.subr.bf16.mxu0 0
        %609 = vmatpush1.bf16.msra.mxu0 0
        %610 = vmatprep.subr.bf16.mxu0 0
        %611 = vmatpush1.bf16.msra.mxu0 0
        %612 = vmatprep.subr.bf16.mxu0 0
        %613 = vmatpush1.bf16.msra.mxu0 0
        %614 = vmatprep.subr.bf16.mxu0 0
        %615 = vmatpush1.bf16.msra.mxu0 0
        %616 = vmatprep.mubr.bf16.mxu0 0
        %617 = vmatmul.mubr.bf16.gmra.mrb[0].mxu0 %v519
        %v618 = vpop.f32.mrb[0].mxu0
        %v619 = vadd.f32 0.0, %v618
        %v620 = vpop.f32.mrb[0].mxu0
        %v621 = vpop.f32.mrb[0].mxu0
        %v622 = vpop.f32.mrb[0].mxu0
        %623 = vdwg.mxu0
        %v624 = vadd.f32 %v518, %v619
        %625 = vst [vmem:[#allocation3] sm:$0xff] %v624
        // Predicated region
        $region65: #{tpu_custom_call.1} parent=47 // pred_check
          %p626 = pneg %p366
        $region66: #{tpu_custom_call.1} parent=47 // pred_check_branch
          %628 = sbr.rel (%p626) target = $region68
        $region67: #{tpu_custom_call.1} parent=47 // pred_region
          %v629 = vld [vmem:[#allocation3] sm:$0xff]
          %v630 = vld [vmem:[%s6] sm:$0x1]
          %v632 = vlaneseq
          %v633 = vshrl.u32 %v632, 7
          %v634 = vsub.s32 0, %v633
          %v635 = vrot.slane %v630, %v634
          %v637 = vadd.f32 %v629, %v635
          %638 = vst [vmem:[%s360] sm:$0xff] %v637
        $region68: #{tpu_custom_call.1} parent=47 // pred_fallthru
          _
        %s639 = sand.u32 %s212, 1
        %s640 = scalar_lea.sflag [#allocation6], %s639
        %s641 = sand.u32 %s212, 1
        %s642 = smul.addr %s641, 8
        %s643 = scalar_lea.vmem [#allocation10], %s642
        // Predicated region
        $region69: #{tpu_custom_call.1} parent=47 // pred_check
          %p644 = pneg %p222
        $region70: #{tpu_custom_call.1} parent=47 // pred_check_branch
          %646 = sbr.rel (%p644) target = $region72
        $region71: #{tpu_custom_call.1} parent=47 // pred_region
          %s648 = ssub.s32 128, 128
          %649 = vsyncadd %s640, %s648
          %s650 = smul.addr %s29, 128
          %s651 = scalar_lea.hbm %s7, %s650
          %s653 = sshll.u32 %s643, 4
          %s654 = int_to_ptr.vmem [resolvable:$true] %s653
          %656 = dma.vmem_to_hbm [thread:$0]  %s654, 128, %s651, %s640
        $region72: #{tpu_custom_call.1} parent=47 // pred_fallthru
          _
      $region48: #{tpu_custom_call.1} parent=5 // pred_fallthru
        _
      %p657 = scmp.le.s32.totalorder 2, %s20
      // Predicated region
      $region73: #{tpu_custom_call.1} parent=5 // pred_check
        %p658 = pneg %p657
      $region74: #{tpu_custom_call.1} parent=5 // pred_check_branch
        %660 = sbr.rel (%p658) target = $region76
      $region75: #{tpu_custom_call.1} parent=5 // pred_region
        %s661 = ssub.s32 %s20, 2
        // Predicated region
        $region77: #{tpu_custom_call.1} parent=75 // pred_check
          %p662 = pneg %p228
        $region78: #{tpu_custom_call.1} parent=75 // pred_check_branch
          %664 = sbr.rel (%p662) target = $region80
        $region79: #{tpu_custom_call.1} parent=75 // pred_region
          %s665 = sand.u32 %s213, 1
          %s666 = scalar_lea.sflag [#allocation6], %s665
          %s667 = sand.u32 %s213, 1
          %s668 = smul.addr %s667, 8
          %s669 = scalar_lea.vmem [#allocation10], %s668
          %670 = dma.done %s666, 128
        $region80: #{tpu_custom_call.1} parent=75 // pred_fallthru
          _
      $region76: #{tpu_custom_call.1} parent=5 // pred_fallthru
        _
    $region6: #{tpu_custom_call.1} parent=1 // loop_footer
      %s24 = sadd.s32 1, %s20
    $region7: #{tpu_custom_call.1} parent=1 // loop_footer_branch
      %19 = sbr.rel target = $region3
    $region8: #{tpu_custom_call.1} parent=1 // loop_exit
      _
    %671 = vsyncpa [#allocation5], 1
    %s672 = scalar_lea.sflag [#allocation5], 1
    %673 = vsyncpa %s672, 1
    %674 = vsyncpa [#allocation8], 1
    %675 = vsyncpa [#allocation6], 1
    %s676 = scalar_lea.sflag [#allocation6], 1
    %677 = vsyncpa %s676, 1

</llo_original>
